<compile_context>
chip_gen: v7x
topology: tpu7x:2x2x1
jax: 0.10.0
libtpu: 0.0.40
codegen_flags: <defaults>
</compile_context>

<pallas_src>
import jax
import jax.numpy as jnp
from jax.experimental import pallas as pl
from jax.experimental.pallas import tpu as pltpu


def _pad_to(x, m):
    return ((x + m - 1) // m) * m


# ---------------------------------------------------------------------------
# Pallas kernels
# ---------------------------------------------------------------------------
def gcn_fused_layer_kernel(a_ref, xw_ref, w_ref, o_ref, acc_ref):
    """o = ( relu(A_tile_row @ XW) ) @ W_pad, accumulated over K tiles in f32."""
    k = pl.program_id(1)
    tk = a_ref.shape[1]

    @pl.when(k == 0)
    def _():
        acc_ref[...] = jnp.zeros_like(acc_ref)

    start = pl.multiple_of(k * tk, tk)
    xw_tile = xw_ref[pl.ds(start, tk), :]          # slice of the VMEM-resident XW
    acc_ref[...] += jnp.dot(a_ref[...], xw_tile, preferred_element_type=jnp.float32)

    @pl.when(k == pl.num_programs(1) - 1)
    def _():
        h = jnp.maximum(acc_ref[...], 0.0)         # ReLU; nn.Dropout(eval) = identity
        o_ref[...] = jnp.dot(
            h, w_ref[...], preferred_element_type=jnp.float32
        ).astype(o_ref.dtype)                      # bf16 XW for the next layer


def gcn_last_layer_kernel(a_ref, xw_ref, o_ref):
    """o = A_tile_row @ XW, accumulated directly into the resident f32 output block."""
    k = pl.program_id(1)
    tk = a_ref.shape[1]

    @pl.when(k == 0)
    def _():
        o_ref[...] = jnp.zeros_like(o_ref)

    start = pl.multiple_of(k * tk, tk)
    xw_tile = xw_ref[pl.ds(start, tk), :]
    o_ref[...] += jnp.dot(a_ref[...], xw_tile, preferred_element_type=jnp.float32)


def _gcn_layer_call(a_pad, xw_pad, w_pad, *, tm, tk, fused):
    n_pad, fp = xw_pad.shape
    grid = (n_pad // tm, n_pad // tk)

    a_spec = pl.BlockSpec((tm, tk), lambda i, k: (i, k))          # A row/col tile (bf16)
    xw_spec = pl.BlockSpec((n_pad, fp), lambda i, k: (0, 0))      # whole XW resident in VMEM
    out_spec = pl.BlockSpec((tm, fp), lambda i, k: (i, 0))        # resident across k

    cp = pltpu.CompilerParams(
        dimension_semantics=("parallel", "arbitrary"),
        vmem_limit_bytes=32 * 1024 * 1024,
    )

    if fused:
        w_spec = pl.BlockSpec((fp, fp), lambda i, k: (0, 0))      # tiny resident W_pad
        return pl.pallas_call(
            gcn_fused_layer_kernel,
            out_shape=jax.ShapeDtypeStruct((n_pad, fp), jnp.bfloat16),
            grid=grid,
            in_specs=[a_spec, xw_spec, w_spec],
            out_specs=out_spec,
            scratch_shapes=[pltpu.VMEM((tm, fp), jnp.float32)],
            compiler_params=cp,
        )(a_pad, xw_pad, w_pad)

    return pl.pallas_call(
        gcn_last_layer_kernel,
        out_shape=jax.ShapeDtypeStruct((n_pad, fp), jnp.float32),
        grid=grid,
        in_specs=[a_spec, xw_spec],
        out_specs=out_spec,
        compiler_params=cp,
    )(a_pad, xw_pad)


# ---------------------------------------------------------------------------
# Graph normalization (plain-JAX glue, built directly at padded size, once)
# ---------------------------------------------------------------------------
def normalized_adjacency_padded(edge_index, num_nodes, n_pad):
    """Padded bf16 D^{-1/2} (A + I) D^{-1/2} with A[dst, src] scatter-added per edge.

    Matches PyG gcn_norm + add_remaining_self_loops: duplicate non-self edges count with
    multiplicity; explicit self-loops are replaced by exactly one self-loop of weight 1.
    """
    src, dst = edge_index[0], edge_index[1]
    not_loop = (src != dst).astype(jnp.float32)
    deg = jnp.ones((num_nodes,), jnp.float32).at[dst].add(not_loop)   # +1 for the self loop
    d_inv_sqrt = 1.0 / jnp.sqrt(deg)                                  # deg >= 1 always
    vals = d_inv_sqrt[dst] * d_inv_sqrt[src] * not_loop

    a = jnp.zeros((n_pad, n_pad), jnp.float32)
    a = a.at[dst, src].add(vals)
    idx = jnp.arange(num_nodes)
    a = a.at[idx, idx].add(d_inv_sqrt * d_inv_sqrt)                   # one self loop each
    return a.astype(jnp.bfloat16)


# ---------------------------------------------------------------------------
# Parameter init (Glorot, true/unpadded fan-in/fan-out)
# ---------------------------------------------------------------------------
def glorot_uniform(key, fan_in, fan_out, dtype=jnp.float32):
    limit = jnp.sqrt(6.0 / (fan_in + fan_out)).astype(dtype)
    return jax.random.uniform(key, (fan_in, fan_out), dtype, -limit, limit)


def init_gcn_base_params(key, in_feats, n_hidden, n_layers):
    dims = [(in_feats, n_hidden)] + [(n_hidden, n_hidden)] * n_layers
    keys = jax.random.split(key, len(dims))
    return [glorot_uniform(k, fi, fo) for k, (fi, fo) in zip(keys, dims)]


# ---------------------------------------------------------------------------
# Tile selection — large tiles, padding granularity independent of tk
# ---------------------------------------------------------------------------
def _choose_tiles(num_nodes):
    if num_nodes <= 1024:
        n_pad = _pad_to(max(num_nodes, 8), 128)
        tm = n_pad // 2 if n_pad >= 256 else n_pad   # >=2 row tiles for v7x megacore
        return n_pad, tm, n_pad
    n_pad = _pad_to(num_nodes, 512)                  # pad to 512, not to tk
    tm = 1024 if n_pad % 1024 == 0 else 512          # bf16 A tile <= 4 MiB (8 MiB dbl-buf)
    tk = next(t for t in (2048, 1024, 512) if n_pad % t == 0)
    return n_pad, tm, tk


# ---------------------------------------------------------------------------
# Forward pass
# ---------------------------------------------------------------------------
def gcn_base_forward(x, edge_index, weights):
    """Forward pass of GCN_base (act=ReLU; nn.Dropout in eval mode => identity)."""
    num_nodes, in_feats = x.shape
    n_hidden = weights[0].shape[1]
    fp = _pad_to(n_hidden, 128)                      # lane-dense hidden width
    n_pad, tm, tk = _choose_tiles(num_nodes)

    a_pad = normalized_adjacency_padded(edge_index, num_nodes, n_pad)

    # First-layer feature transform (tiny) in plain XLA, padded + cast to bf16.
    xw = (
        jnp.zeros((n_pad, fp), jnp.float32)
        .at[:num_nodes, :n_hidden]
        .set(x.astype(jnp.float32) @ weights[0])
        .astype(jnp.bfloat16)
    )

    # Hidden->hidden weights, zero-padded to (fp, fp); W_pad[l] fuses into layer l-1's epilogue.
    w_pads = [
        jnp.zeros((fp, fp), jnp.float32).at[: w.shape[0], : w.shape[1]].set(w)
        for w in weights[1:]
    ]

    n_total = len(weights)
    for li in range(n_total - 1):
        # layer li aggregation + ReLU, fused with layer (li+1)'s feature transform
        xw = _gcn_layer_call(a_pad, xw, w_pads[li], tm=tm, tk=tk, fused=True)
    out = _gcn_layer_call(a_pad, xw, None, tm=tm, tk=tk, fused=False)

    return out[:num_nodes, :n_hidden]


if __name__ == "__main__":
    key = jax.random.PRNGKey(0)
    k_x, k_e, k_w = jax.random.split(key, 3)

    num_nodes = 64
    in_feats = 16
    n_hidden = 32
    n_layers = 2          # -> 3 GCNConv layers total
    num_edges = 256

    x = jax.random.normal(k_x, (num_nodes, in_feats), jnp.float32)
    edge_index = jax.random.randint(k_e, (2, num_edges), 0, num_nodes, jnp.int32)
    weights = init_gcn_base_params(k_w, in_feats, n_hidden, n_layers)

    out = jax.jit(gcn_base_forward)(x, edge_index, weights)
    out = jax.block_until_ready(out)
    assert out.shape == (num_nodes, n_hidden)
    assert bool(jnp.all(jnp.isfinite(out)))
    print("KERNEL_OK")
</pallas_src>

<mosaic_0001>
module attributes {stable_mosaic.version = 11 : i64} {
  func.func private @main(%arg0: i32) attributes {dimension_semantics = [#tpu.dimension_semantics<core_parallel>], iteration_bounds = array<i64: 2>, tpu.core_type = #tpu.core_type<sc_scalar_subcore>, window_params = []} {
    return
  }
}

module attributes {stable_mosaic.version = 11 : i64} {
  func.func private @main(%arg0: i32) attributes {dimension_semantics = [#tpu.dimension_semantics<core_parallel>], iteration_bounds = array<i64: 2>, tpu.core_type = #tpu.core_type<sc_scalar_subcore>, window_params = []} {
    return
  }
}

module attributes {stable_mosaic.version = 11 : i64} {
  func.func @gcn_fused_layer_kernel(%arg0: i32, %arg1: i32, %arg2: memref<128x128xbf16, #tpu.memory_space<vmem>>, %arg3: memref<128x128xbf16, #tpu.memory_space<vmem>>, %arg4: memref<128x128xf32, #tpu.memory_space<vmem>>, %arg5: memref<128x128xbf16, #tpu.memory_space<vmem>>, %arg6: memref<128x128xf32, #tpu.memory_space<vmem>>) attributes {dimension_semantics = [#tpu.dimension_semantics<parallel>, #tpu.dimension_semantics<arbitrary>], iteration_bounds = array<i64: 1, 1>, scalar_prefetch = 0 : i64, scratch_operands = 1 : i64, tpu.core_type = #tpu.core_type<tc>, window_params = [{transform_indices = @transform_0, window_bounds = array<i64: 128, 128>}, {pipeline_mode = #tpu.pipeline_mode<synchronous>, transform_indices = @transform_1, window_bounds = array<i64: 128, 128>}, {pipeline_mode = #tpu.pipeline_mode<synchronous>, transform_indices = @transform_2, window_bounds = array<i64: 128, 128>}, {transform_indices = @transform_3, window_bounds = array<i64: 128, 128>}]} {
    %c0_i32 = arith.constant 0 : i32
    %0 = arith.cmpi eq, %arg1, %c0_i32 : i32
    %1 = arith.extui %0 : i1 to i32
    %c0_i32_0 = arith.constant 0 : i32
    %2 = arith.cmpi ne, %1, %c0_i32_0 : i32
    scf.if %2 {
      %cst_9 = arith.constant 0.000000e+00 : f32
      %15 = vector.broadcast %cst_9 : f32 to vector<128x128xf32>
      %c0_10 = arith.constant 0 : index
      %c0_11 = arith.constant 0 : index
      %16 = vector.load %arg6[%c0_10, %c0_11] : memref<128x128xf32, #tpu.memory_space<vmem>>, vector<128x128xf32>
      tpu.vector_store %arg6[%c0_10, %c0_11], %15 {strides = array<i32>} : memref<128x128xf32, #tpu.memory_space<vmem>>, vector<128x128xf32>,
    } else {
    }
    %c128_i32 = arith.constant 128 : i32
    %3 = arith.muli %arg1, %c128_i32 : i32
    %4 = tpu.assume_multiple %3, 128 : i32
    %5 = arith.index_cast %4 : i32 to index
    %c0 = arith.constant 0 : index
    %6 = vector.load %arg3[%5, %c0] : memref<128x128xbf16, #tpu.memory_space<vmem>>, vector<128x128xbf16>
    %c0_1 = arith.constant 0 : index
    %c0_2 = arith.constant 0 : index
    %7 = vector.load %arg6[%c0_1, %c0_2] : memref<128x128xf32, #tpu.memory_space<vmem>>, vector<128x128xf32>
    %c0_3 = arith.constant 0 : index
    %c0_4 = arith.constant 0 : index
    %8 = vector.load %arg2[%c0_3, %c0_4] : memref<128x128xbf16, #tpu.memory_space<vmem>>, vector<128x128xbf16>
    %cst = arith.constant dense<0.000000e+00> : vector<128x128xf32>
    %9 = tpu.matmul %8, %6, %cst {dimension_numbers = #tpu.dot_dimension_numbers<[1], [0], [0], [1], [0, 0, 1, 1], [], []>} : vector<128x128xbf16>, vector<128x128xbf16>, vector<128x128xf32> -> vector<128x128xf32>
    %10 = arith.addf %7, %9 : vector<128x128xf32>
    %c0_5 = arith.constant 0 : index
    %c0_6 = arith.constant 0 : index
    %11 = vector.load %arg6[%c0_5, %c0_6] : memref<128x128xf32, #tpu.memory_space<vmem>>, vector<128x128xf32>
    tpu.vector_store %arg6[%c0_5, %c0_6], %10 {strides = array<i32>} : memref<128x128xf32, #tpu.memory_space<vmem>>, vector<128x128xf32>,
    %c0_i32_7 = arith.constant 0 : i32
    %12 = arith.cmpi eq, %arg1, %c0_i32_7 : i32
    %13 = arith.extui %12 : i1 to i32
    %c0_i32_8 = arith.constant 0 : i32
    %14 = arith.cmpi ne, %13, %c0_i32_8 : i32
    scf.if %14 {
      %c0_9 = arith.constant 0 : index
      %c0_10 = arith.constant 0 : index
      %15 = vector.load %arg6[%c0_9, %c0_10] : memref<128x128xf32, #tpu.memory_space<vmem>>, vector<128x128xf32>
      %cst_11 = arith.constant 0.000000e+00 : f32
      %16 = vector.broadcast %cst_11 : f32 to vector<128x128xf32>
      %17 = arith.maximumf %15, %16 : vector<128x128xf32>
      %c0_12 = arith.constant 0 : index
      %c0_13 = arith.constant 0 : index
      %18 = vector.load %arg4[%c0_12, %c0_13] : memref<128x128xf32, #tpu.memory_space<vmem>>, vector<128x128xf32>
      %cst_14 = arith.constant dense<0.000000e+00> : vector<128x128xf32>
      %19 = tpu.matmul %17, %18, %cst_14 {dimension_numbers = #tpu.dot_dimension_numbers<[1], [0], [0], [1], [0, 0, 1, 1], [], []>} : vector<128x128xf32>, vector<128x128xf32>, vector<128x128xf32> -> vector<128x128xf32>
      %20 = arith.truncf %19 : vector<128x128xf32> to vector<128x128xbf16>
      %c0_15 = arith.constant 0 : index
      %c0_16 = arith.constant 0 : index
      %21 = vector.load %arg5[%c0_15, %c0_16] : memref<128x128xbf16, #tpu.memory_space<vmem>>, vector<128x128xbf16>
      tpu.vector_store %arg5[%c0_15, %c0_16], %20 {strides = array<i32>} : memref<128x128xbf16, #tpu.memory_space<vmem>>, vector<128x128xbf16>,
    } else {
    }
    return
  }
  func.func @transform_0(%arg0: i32, %arg1: i32) -> (i32, i32) {
    %c0_i32 = arith.constant 0 : i32
    return %arg0, %arg1 : i32, i32
  }
  func.func @transform_1(%arg0: i32, %arg1: i32) -> (i32, i32) {
    %c0_i32 = arith.constant 0 : i32
    %c0_i32_0 = arith.constant 0 : i32
    %c0_i32_1 = arith.constant 0 : i32
    return %c0_i32, %c0_i32_0 : i32, i32
  }
  func.func @transform_2(%arg0: i32, %arg1: i32) -> (i32, i32) {
    %c0_i32 = arith.constant 0 : i32
    %c0_i32_0 = arith.constant 0 : i32
    %c0_i32_1 = arith.constant 0 : i32
    return %c0_i32, %c0_i32_0 : i32, i32
  }
  func.func @transform_3(%arg0: i32, %arg1: i32) -> (i32, i32) {
    %c0_i32 = arith.constant 0 : i32
    %c0_i32_0 = arith.constant 0 : i32
    return %arg0, %c0_i32 : i32, i32
  }
}

module attributes {stable_mosaic.version = 11 : i64} {
  func.func @gcn_last_layer_kernel(%arg0: i32, %arg1: i32, %arg2: memref<128x128xbf16, #tpu.memory_space<vmem>>, %arg3: memref<128x128xbf16, #tpu.memory_space<vmem>>, %arg4: memref<128x128xf32, #tpu.memory_space<vmem>>) attributes {dimension_semantics = [#tpu.dimension_semantics<parallel>, #tpu.dimension_semantics<arbitrary>], iteration_bounds = array<i64: 1, 1>, scalar_prefetch = 0 : i64, scratch_operands = 0 : i64, tpu.core_type = #tpu.core_type<tc>, window_params = [{transform_indices = @transform_0, window_bounds = array<i64: 128, 128>}, {pipeline_mode = #tpu.pipeline_mode<synchronous>, transform_indices = @transform_1, window_bounds = array<i64: 128, 128>}, {transform_indices = @transform_2, window_bounds = array<i64: 128, 128>}]} {
    %c0_i32 = arith.constant 0 : i32
    %0 = arith.cmpi eq, %arg1, %c0_i32 : i32
    %1 = arith.extui %0 : i1 to i32
    %c0_i32_0 = arith.constant 0 : i32
    %2 = arith.cmpi ne, %1, %c0_i32_0 : i32
    scf.if %2 {
      %cst_7 = arith.constant 0.000000e+00 : f32
      %12 = vector.broadcast %cst_7 : f32 to vector<128x128xf32>
      %c0_8 = arith.constant 0 : index
      %c0_9 = arith.constant 0 : index
      %13 = vector.load %arg4[%c0_8, %c0_9] : memref<128x128xf32, #tpu.memory_space<vmem>>, vector<128x128xf32>
      tpu.vector_store %arg4[%c0_8, %c0_9], %12 {strides = array<i32>} : memref<128x128xf32, #tpu.memory_space<vmem>>, vector<128x128xf32>,
    } else {
    }
    %c128_i32 = arith.constant 128 : i32
    %3 = arith.muli %arg1, %c128_i32 : i32
    %4 = tpu.assume_multiple %3, 128 : i32
    %5 = arith.index_cast %4 : i32 to index
    %c0 = arith.constant 0 : index
    %6 = vector.load %arg3[%5, %c0] : memref<128x128xbf16, #tpu.memory_space<vmem>>, vector<128x128xbf16>
    %c0_1 = arith.constant 0 : index
    %c0_2 = arith.constant 0 : index
    %7 = vector.load %arg4[%c0_1, %c0_2] : memref<128x128xf32, #tpu.memory_space<vmem>>, vector<128x128xf32>
    %c0_3 = arith.constant 0 : index
    %c0_4 = arith.constant 0 : index
    %8 = vector.load %arg2[%c0_3, %c0_4] : memref<128x128xbf16, #tpu.memory_space<vmem>>, vector<128x128xbf16>
    %cst = arith.constant dense<0.000000e+00> : vector<128x128xf32>
    %9 = tpu.matmul %8, %6, %cst {dimension_numbers = #tpu.dot_dimension_numbers<[1], [0], [0], [1], [0, 0, 1, 1], [], []>} : vector<128x128xbf16>, vector<128x128xbf16>, vector<128x128xf32> -> vector<128x128xf32>
    %10 = arith.addf %7, %9 : vector<128x128xf32>
    %c0_5 = arith.constant 0 : index
    %c0_6 = arith.constant 0 : index
    %11 = vector.load %arg4[%c0_5, %c0_6] : memref<128x128xf32, #tpu.memory_space<vmem>>, vector<128x128xf32>
    tpu.vector_store %arg4[%c0_5, %c0_6], %10 {strides = array<i32>} : memref<128x128xf32, #tpu.memory_space<vmem>>, vector<128x128xf32>,
    return
  }
  func.func @transform_0(%arg0: i32, %arg1: i32) -> (i32, i32) {
    %c0_i32 = arith.constant 0 : i32
    return %arg0, %arg1 : i32, i32
  }
  func.func @transform_1(%arg0: i32, %arg1: i32) -> (i32, i32) {
    %c0_i32 = arith.constant 0 : i32
    %c0_i32_0 = arith.constant 0 : i32
    %c0_i32_1 = arith.constant 0 : i32
    return %c0_i32, %c0_i32_0 : i32, i32
  }
  func.func @transform_2(%arg0: i32, %arg1: i32) -> (i32, i32) {
    %c0_i32 = arith.constant 0 : i32
    %c0_i32_0 = arith.constant 0 : i32
    return %arg0, %c0_i32 : i32, i32
  }
}

</mosaic_0001>

<llo_original>
// kernel: gcn_base_forward.3
$region0: #{gcn_base_forward.3}
  #allocation0 [shape = 'u32[]', space=smem, size = 0x4, offset = 0x4, fixed_abs, tag = 'smem constant byte address 0x4 - core index']
  #allocation1 [shape = 'u32[144,128]{1,0:T(1,128)}', space=vmem, size = 0x12000, scoped, tag = 'internal scratch']
  #allocation2 [shape = 'f32[128,128]{1,0:T(8,128)}', space=vmem, size = 0x10000, scoped, tag = 'scratch operand']
  %s0 = inlined_call_operand.vmem [shape: bf16[128,128], index: 0, kind: input, shape index: {}]
  %s1 = inlined_call_operand.vmem [shape: bf16[128,128], index: 1, kind: input, shape index: {}]
  %s2 = inlined_call_operand.vmem [shape: f32[128,128], index: 2, kind: input, shape index: {}]
  %s3 = inlined_call_operand.vmem [shape: bf16[128,128], index: 3, kind: output, shape index: {}]
  %s4 = sld [smem:[#allocation0]]
  $region30: #{gcn_base_forward.3} parent=0
    _
  %s6 = ssub.s32 1, %s4
  %s7 = scalar_select 0, %s6, %s4
  // Predicated region
  $region2: #{gcn_base_forward.3} parent=0 // pred_check
    _
  $region3: #{gcn_base_forward.3} parent=0 // pred_check_branch
    %9 = sbr.rel (0) target = $region5
  $region4: #{gcn_base_forward.3} parent=0 // pred_region
    _
  $region5: #{gcn_base_forward.3} parent=0 // pred_fallthru
    _
  // Predicated region
  $region6: #{gcn_base_forward.3} parent=0 // pred_check
    _
  $region7: #{gcn_base_forward.3} parent=0 // pred_check_branch
    %11 = sbr.rel (0) target = $region9
  $region8: #{gcn_base_forward.3} parent=0 // pred_region
    _
  $region9: #{gcn_base_forward.3} parent=0 // pred_fallthru
    _
  // Predicated region
  $region10: #{gcn_base_forward.3} parent=0 // pred_check
    _
  $region11: #{gcn_base_forward.3} parent=0 // pred_check_branch
    %13 = sbr.rel (0) target = $region13
  $region12: #{gcn_base_forward.3} parent=0 // pred_region
    _
  $region13: #{gcn_base_forward.3} parent=0 // pred_fallthru
    _
  %p15 = scmp.eq.s32.totalorder 0, 0
  // Predicated region
  $region14: #{gcn_base_forward.3} parent=0 // pred_check
    %p16 = pneg %p15
  $region15: #{gcn_base_forward.3} parent=0 // pred_check_branch
    %18 = sbr.rel (%p16) target = $region17
  $region16: #{gcn_base_forward.3} parent=0 // pred_region
    %19 = vst [vmem:[#allocation2] sm:$0xff] 0.0
    %20 = vst [vmem:[#allocation2 + $0x8] sm:$0xff] 0.0
    %21 = vst [vmem:[#allocation2 + $0x10] sm:$0xff] 0.0
    %22 = vst [vmem:[#allocation2 + $0x18] sm:$0xff] 0.0
    %23 = vst [vmem:[#allocation2 + $0x20] sm:$0xff] 0.0
    %24 = vst [vmem:[#allocation2 + $0x28] sm:$0xff] 0.0
    %25 = vst [vmem:[#allocation2 + $0x30] sm:$0xff] 0.0
    %26 = vst [vmem:[#allocation2 + $0x38] sm:$0xff] 0.0
    %27 = vst [vmem:[#allocation2 + $0x40] sm:$0xff] 0.0
    %28 = vst [vmem:[#allocation2 + $0x48] sm:$0xff] 0.0
    %29 = vst [vmem:[#allocation2 + $0x50] sm:$0xff] 0.0
    %30 = vst [vmem:[#allocation2 + $0x58] sm:$0xff] 0.0
    %31 = vst [vmem:[#allocation2 + $0x60] sm:$0xff] 0.0
    %32 = vst [vmem:[#allocation2 + $0x68] sm:$0xff] 0.0
    %33 = vst [vmem:[#allocation2 + $0x70] sm:$0xff] 0.0
    %34 = vst [vmem:[#allocation2 + $0x78] sm:$0xff] 0.0
  $region17: #{gcn_base_forward.3} parent=0 // pred_fallthru
    _
  %s35 = smul.u32 0, 128
  %s36 = sshra.s32 %s35, 3
  %s37 = sand.u32 %s35, 7
  %s38 = smul.addr %s36, 4
  %s39 = scalar_lea.vmem %s1, %s38
  %v40 = vld [vmem:[%s39] sm:$0xf]
  %v41 = vld [vmem:[%s39 + $0x4] sm:$0xf]
  %v42 = vld [vmem:[%s39 + $0x8] sm:$0xf]
  %v43 = vld [vmem:[%s39 + $0xc] sm:$0xf]
  %v44 = vld [vmem:[%s39 + $0x10] sm:$0xf]
  %v45 = vld [vmem:[%s39 + $0x14] sm:$0xf]
  %v46 = vld [vmem:[%s39 + $0x18] sm:$0xf]
  %v47 = vld [vmem:[%s39 + $0x1c] sm:$0xf]
  %v48 = vld [vmem:[%s39 + $0x20] sm:$0xf]
  %v49 = vld [vmem:[%s39 + $0x24] sm:$0xf]
  %v50 = vld [vmem:[%s39 + $0x28] sm:$0xf]
  %v51 = vld [vmem:[%s39 + $0x2c] sm:$0xf]
  %v52 = vld [vmem:[%s39 + $0x30] sm:$0xf]
  %v53 = vld [vmem:[%s39 + $0x34] sm:$0xf]
  %v54 = vld [vmem:[%s39 + $0x38] sm:$0xf]
  %v55 = vld [vmem:[%s39 + $0x3c] sm:$0xf]
  %v56 = vld [vmem:[#allocation2] sm:$0xff]
  %v57 = vld [vmem:[#allocation2 + $0x8] sm:$0xff]
  %v58 = vld [vmem:[#allocation2 + $0x10] sm:$0xff]
  %v59 = vld [vmem:[#allocation2 + $0x18] sm:$0xff]
  %v60 = vld [vmem:[#allocation2 + $0x20] sm:$0xff]
  %v61 = vld [vmem:[#allocation2 + $0x28] sm:$0xff]
  %v62 = vld [vmem:[#allocation2 + $0x30] sm:$0xff]
  %v63 = vld [vmem:[#allocation2 + $0x38] sm:$0xff]
  %v64 = vld [vmem:[#allocation2 + $0x40] sm:$0xff]
  %v65 = vld [vmem:[#allocation2 + $0x48] sm:$0xff]
  %v66 = vld [vmem:[#allocation2 + $0x50] sm:$0xff]
  %v67 = vld [vmem:[#allocation2 + $0x58] sm:$0xff]
  %v68 = vld [vmem:[#allocation2 + $0x60] sm:$0xff]
  %v69 = vld [vmem:[#allocation2 + $0x68] sm:$0xff]
  %v70 = vld [vmem:[#allocation2 + $0x70] sm:$0xff]
  %v71 = vld [vmem:[#allocation2 + $0x78] sm:$0xff]
  %v72 = vld [vmem:[%s0] sm:$0xf]
  %v73 = vld [vmem:[%s0 + $0x4] sm:$0xf]
  %v74 = vld [vmem:[%s0 + $0x8] sm:$0xf]
  %v75 = vld [vmem:[%s0 + $0xc] sm:$0xf]
  %v76 = vld [vmem:[%s0 + $0x10] sm:$0xf]
  %v77 = vld [vmem:[%s0 + $0x14] sm:$0xf]
  %v78 = vld [vmem:[%s0 + $0x18] sm:$0xf]
  %v79 = vld [vmem:[%s0 + $0x1c] sm:$0xf]
  %v80 = vld [vmem:[%s0 + $0x20] sm:$0xf]
  %v81 = vld [vmem:[%s0 + $0x24] sm:$0xf]
  %v82 = vld [vmem:[%s0 + $0x28] sm:$0xf]
  %v83 = vld [vmem:[%s0 + $0x2c] sm:$0xf]
  %v84 = vld [vmem:[%s0 + $0x30] sm:$0xf]
  %v85 = vld [vmem:[%s0 + $0x34] sm:$0xf]
  %v86 = vld [vmem:[%s0 + $0x38] sm:$0xf]
  %v87 = vld [vmem:[%s0 + $0x3c] sm:$0xf]
  %v104 = vunpack.c.l.b16 %v72
  %v105 = vunpack.c.l.b16 %v73
  %v106 = vunpack.c.l.b16 %v74
  %v107 = vunpack.c.l.b16 %v75
  %v108 = vunpack.c.l.b16 %v76
  %v109 = vunpack.c.l.b16 %v77
  %v110 = vunpack.c.l.b16 %v78
  %v111 = vunpack.c.l.b16 %v79
  %v112 = vunpack.c.l.b16 %v80
  %v113 = vunpack.c.l.b16 %v81
  %v114 = vunpack.c.l.b16 %v82
  %v115 = vunpack.c.l.b16 %v83
  %v116 = vunpack.c.l.b16 %v84
  %v117 = vunpack.c.l.b16 %v85
  %v118 = vunpack.c.l.b16 %v86
  %v119 = vunpack.c.l.b16 %v87
  %v120 = vpack.c.b16 %v105, %v104
  %v121 = vpack.c.b16 %v107, %v106
  %v122 = vpack.c.b16 %v109, %v108
  %v123 = vpack.c.b16 %v111, %v110
  %v124 = vpack.c.b16 %v113, %v112
  %v125 = vpack.c.b16 %v115, %v114
  %v126 = vpack.c.b16 %v117, %v116
  %v127 = vpack.c.b16 %v119, %v118
  %v152 = vunpack.c.l.b16 %v40
  %v153 = vunpack.c.l.b16 %v41
  %v154 = vunpack.c.l.b16 %v42
  %v155 = vunpack.c.l.b16 %v43
  %v156 = vunpack.c.l.b16 %v44
  %v157 = vunpack.c.l.b16 %v45
  %v158 = vunpack.c.l.b16 %v46
  %v159 = vunpack.c.l.b16 %v47
  %v160 = vunpack.c.l.b16 %v48
  %v161 = vunpack.c.l.b16 %v49
  %v162 = vunpack.c.l.b16 %v50
  %v163 = vunpack.c.l.b16 %v51
  %v164 = vunpack.c.l.b16 %v52
  %v165 = vunpack.c.l.b16 %v53
  %v166 = vunpack.c.l.b16 %v54
  %v167 = vunpack.c.l.b16 %v55
  %v168 = vpack.c.b16 %v153, %v152
  %v169 = vpack.c.b16 %v155, %v154
  %v170 = vpack.c.b16 %v157, %v156
  %v171 = vpack.c.b16 %v159, %v158
  %v172 = vpack.c.b16 %v161, %v160
  %v173 = vpack.c.b16 %v163, %v162
  %v174 = vpack.c.b16 %v165, %v164
  %v175 = vpack.c.b16 %v167, %v166
  %184 = vmatprep.subr.bf16.mxu0 0
  %185 = vmatpush1.bf16.msra.mxu0 %v168
  %186 = vmatprep.subr.bf16.mxu0 0
  %187 = vmatpush1.bf16.msra.mxu0 %v169
  %188 = vmatprep.subr.bf16.mxu0 0
  %189 = vmatpush1.bf16.msra.mxu0 %v170
  %190 = vmatprep.subr.bf16.mxu0 0
  %191 = vmatpush1.bf16.msra.mxu0 %v171
  %192 = vmatprep.subr.bf16.mxu0 0
  %193 = vmatpush1.bf16.msra.mxu0 %v172
  %194 = vmatprep.subr.bf16.mxu0 0
  %195 = vmatpush1.bf16.msra.mxu0 %v173
  %196 = vmatprep.subr.bf16.mxu0 0
  %197 = vmatpush1.bf16.msra.mxu0 %v174
  %198 = vmatprep.subr.bf16.mxu0 0
  %199 = vmatpush1.bf16.msra.mxu0 %v175
  %200 = vmatprep.subr.bf16.mxu0 0
  %201 = vmatpush1.bf16.msra.mxu0 0
  %202 = vmatprep.subr.bf16.mxu0 0
  %203 = vmatpush1.bf16.msra.mxu0 0
  %204 = vmatprep.subr.bf16.mxu0 0
  %205 = vmatpush1.bf16.msra.mxu0 0
  %206 = vmatprep.subr.bf16.mxu0 0
  %207 = vmatpush1.bf16.msra.mxu0 0
  %208 = vmatprep.subr.bf16.mxu0 0
  %209 = vmatpush1.bf16.msra.mxu0 0
  %210 = vmatprep.subr.bf16.mxu0 0
  %211 = vmatpush1.bf16.msra.mxu0 0
  %212 = vmatprep.subr.bf16.mxu0 0
  %213 = vmatpush1.bf16.msra.mxu0 0
  %214 = vmatprep.subr.bf16.mxu0 0
  %215 = vmatpush1.bf16.msra.mxu0 0
  %216 = vmatprep.mubr.bf16.mxu0 0
  %217 = vmatmul.mubr.bf16.gmra.mrb[0].mxu0 %v120
  %v218 = vpop.f32.mrb[0].mxu0
  %v219 = vadd.f32 0.0, %v218
  %v220 = vpop.f32.mrb[0].mxu0
  %v221 = vpop.f32.mrb[0].mxu0
  %v222 = vadd.f32 0.0, %v221
  %v223 = vpop.f32.mrb[0].mxu0
  %224 = vmatprep.mubr.bf16.mxu0 0
  %225 = vmatmul.mubr.bf16.gmra.mrb[0].mxu0 %v121
  %v226 = vpop.f32.mrb[0].mxu0
  %v227 = vadd.f32 0.0, %v226
  %v228 = vpop.f32.mrb[0].mxu0
  %v229 = vpop.f32.mrb[0].mxu0
  %v230 = vadd.f32 0.0, %v229
  %v231 = vpop.f32.mrb[0].mxu0
  %232 = vmatprep.mubr.bf16.mxu0 0
  %233 = vmatmul.mubr.bf16.gmra.mrb[0].mxu0 %v122
  %v234 = vpop.f32.mrb[0].mxu0
  %v235 = vadd.f32 0.0, %v234
  %v236 = vpop.f32.mrb[0].mxu0
  %v237 = vpop.f32.mrb[0].mxu0
  %v238 = vadd.f32 0.0, %v237
  %v239 = vpop.f32.mrb[0].mxu0
  %240 = vmatprep.mubr.bf16.mxu0 0
  %241 = vmatmul.mubr.bf16.gmra.mrb[0].mxu0 %v123
  %v242 = vpop.f32.mrb[0].mxu0
  %v243 = vadd.f32 0.0, %v242
  %v244 = vpop.f32.mrb[0].mxu0
  %v245 = vpop.f32.mrb[0].mxu0
  %v246 = vadd.f32 0.0, %v245
  %v247 = vpop.f32.mrb[0].mxu0
  %248 = vmatprep.mubr.bf16.mxu0 0
  %249 = vmatmul.mubr.bf16.gmra.mrb[0].mxu0 %v124
  %v250 = vpop.f32.mrb[0].mxu0
  %v251 = vadd.f32 0.0, %v250
  %v252 = vpop.f32.mrb[0].mxu0
  %v253 = vpop.f32.mrb[0].mxu0
  %v254 = vadd.f32 0.0, %v253
  %v255 = vpop.f32.mrb[0].mxu0
  %256 = vmatprep.mubr.bf16.mxu0 0
  %257 = vmatmul.mubr.bf16.gmra.mrb[0].mxu0 %v125
  %v258 = vpop.f32.mrb[0].mxu0
  %v259 = vadd.f32 0.0, %v258
  %v260 = vpop.f32.mrb[0].mxu0
  %v261 = vpop.f32.mrb[0].mxu0
  %v262 = vadd.f32 0.0, %v261
  %v263 = vpop.f32.mrb[0].mxu0
  %264 = vmatprep.mubr.bf16.mxu0 0
  %265 = vmatmul.mubr.bf16.gmra.mrb[0].mxu0 %v126
  %v266 = vpop.f32.mrb[0].mxu0
  %v267 = vadd.f32 0.0, %v266
  %v268 = vpop.f32.mrb[0].mxu0
  %v269 = vpop.f32.mrb[0].mxu0
  %v270 = vadd.f32 0.0, %v269
  %v271 = vpop.f32.mrb[0].mxu0
  %272 = vmatprep.mubr.bf16.mxu0 0
  %273 = vmatmul.mubr.bf16.gmra.mrb[0].mxu0 %v127
  %v274 = vpop.f32.mrb[0].mxu0
  %v275 = vadd.f32 0.0, %v274
  %v276 = vpop.f32.mrb[0].mxu0
  %v277 = vpop.f32.mrb[0].mxu0
  %v278 = vadd.f32 0.0, %v277
  %v279 = vpop.f32.mrb[0].mxu0
  %280 = vdwg.mxu0
  %v281 = vadd.f32 %v56, %v219
  %v282 = vadd.f32 %v57, %v222
  %v283 = vadd.f32 %v58, %v227
  %v284 = vadd.f32 %v59, %v230
  %v285 = vadd.f32 %v60, %v235
  %v286 = vadd.f32 %v61, %v238
  %v287 = vadd.f32 %v62, %v243
  %v288 = vadd.f32 %v63, %v246
  %v289 = vadd.f32 %v64, %v251
  %v290 = vadd.f32 %v65, %v254
  %v291 = vadd.f32 %v66, %v259
  %v292 = vadd.f32 %v67, %v262
  %v293 = vadd.f32 %v68, %v267
  %v294 = vadd.f32 %v69, %v270
  %v295 = vadd.f32 %v70, %v275
  %v296 = vadd.f32 %v71, %v278
  %297 = vst [vmem:[#allocation2] sm:$0xff] %v281
  %298 = vst [vmem:[#allocation2 + $0x8] sm:$0xff] %v282
  %299 = vst [vmem:[#allocation2 + $0x10] sm:$0xff] %v283
  %300 = vst [vmem:[#allocation2 + $0x18] sm:$0xff] %v284
  %301 = vst [vmem:[#allocation2 + $0x20] sm:$0xff] %v285
  %302 = vst [vmem:[#allocation2 + $0x28] sm:$0xff] %v286
  %303 = vst [vmem:[#allocation2 + $0x30] sm:$0xff] %v287
  %304 = vst [vmem:[#allocation2 + $0x38] sm:$0xff] %v288
  %305 = vst [vmem:[#allocation2 + $0x40] sm:$0xff] %v289
  %306 = vst [vmem:[#allocation2 + $0x48] sm:$0xff] %v290
  %307 = vst [vmem:[#allocation2 + $0x50] sm:$0xff] %v291
  %308 = vst [vmem:[#allocation2 + $0x58] sm:$0xff] %v292
  %309 = vst [vmem:[#allocation2 + $0x60] sm:$0xff] %v293
  %310 = vst [vmem:[#allocation2 + $0x68] sm:$0xff] %v294
  %311 = vst [vmem:[#allocation2 + $0x70] sm:$0xff] %v295
  %312 = vst [vmem:[#allocation2 + $0x78] sm:$0xff] %v296
  // Predicated region
  $region18: #{gcn_base_forward.3} parent=0 // pred_check
    %p313 = pneg %p15
  $region19: #{gcn_base_forward.3} parent=0 // pred_check_branch
    %315 = sbr.rel (%p313) target = $region21
  $region20: #{gcn_base_forward.3} parent=0 // pred_region
    %v316 = vld [vmem:[#allocation2] sm:$0xff]
    %v317 = vld [vmem:[#allocation2 + $0x8] sm:$0xff]
    %v318 = vld [vmem:[#allocation2 + $0x10] sm:$0xff]
    %v319 = vld [vmem:[#allocation2 + $0x18] sm:$0xff]
    %v320 = vld [vmem:[#allocation2 + $0x20] sm:$0xff]
    %v321 = vld [vmem:[#allocation2 + $0x28] sm:$0xff]
    %v322 = vld [vmem:[#allocation2 + $0x30] sm:$0xff]
    %v323 = vld [vmem:[#allocation2 + $0x38] sm:$0xff]
    %v324 = vld [vmem:[#allocation2 + $0x40] sm:$0xff]
    %v325 = vld [vmem:[#allocation2 + $0x48] sm:$0xff]
    %v326 = vld [vmem:[#allocation2 + $0x50] sm:$0xff]
    %v327 = vld [vmem:[#allocation2 + $0x58] sm:$0xff]
    %v328 = vld [vmem:[#allocation2 + $0x60] sm:$0xff]
    %v329 = vld [vmem:[#allocation2 + $0x68] sm:$0xff]
    %v330 = vld [vmem:[#allocation2 + $0x70] sm:$0xff]
    %v331 = vld [vmem:[#allocation2 + $0x78] sm:$0xff]
    %v332 = vmax.f32 %v316, 0.0
    %v333 = vmax.f32 %v317, 0.0
    %v334 = vmax.f32 %v318, 0.0
    %v335 = vmax.f32 %v319, 0.0
    %v336 = vmax.f32 %v320, 0.0
    %v337 = vmax.f32 %v321, 0.0
    %v338 = vmax.f32 %v322, 0.0
    %v339 = vmax.f32 %v323, 0.0
    %v340 = vmax.f32 %v324, 0.0
    %v341 = vmax.f32 %v325, 0.0
    %v342 = vmax.f32 %v326, 0.0
    %v343 = vmax.f32 %v327, 0.0
    %v344 = vmax.f32 %v328, 0.0
    %v345 = vmax.f32 %v329, 0.0
    %v346 = vmax.f32 %v330, 0.0
    %v347 = vmax.f32 %v331, 0.0
    %v348 = vld [vmem:[%s2] sm:$0xff]
    %v349 = vld [vmem:[%s2 + $0x8] sm:$0xff]
    %v350 = vld [vmem:[%s2 + $0x10] sm:$0xff]
    %v351 = vld [vmem:[%s2 + $0x18] sm:$0xff]
    %v352 = vld [vmem:[%s2 + $0x20] sm:$0xff]
    %v353 = vld [vmem:[%s2 + $0x28] sm:$0xff]
    %v354 = vld [vmem:[%s2 + $0x30] sm:$0xff]
    %v355 = vld [vmem:[%s2 + $0x38] sm:$0xff]
    %v356 = vld [vmem:[%s2 + $0x40] sm:$0xff]
    %v357 = vld [vmem:[%s2 + $0x48] sm:$0xff]
    %v358 = vld [vmem:[%s2 + $0x50] sm:$0xff]
    %v359 = vld [vmem:[%s2 + $0x58] sm:$0xff]
    %v360 = vld [vmem:[%s2 + $0x60] sm:$0xff]
    %v361 = vld [vmem:[%s2 + $0x68] sm:$0xff]
    %v362 = vld [vmem:[%s2 + $0x70] sm:$0xff]
    %v363 = vld [vmem:[%s2 + $0x78] sm:$0xff]
    %364 = vmatprep.subr.mxu0 0.0
    %365 = vmatpush1.msra.mxu0 %v348
    %366 = vmatprep.subr.mxu0 0.0
    %367 = vmatpush1.msra.mxu0 %v349
    %368 = vmatprep.subr.mxu0 0.0
    %369 = vmatpush1.msra.mxu0 %v350
    %370 = vmatprep.subr.mxu0 0.0
    %371 = vmatpush1.msra.mxu0 %v351
    %372 = vmatprep.subr.mxu0 0.0
    %373 = vmatpush1.msra.mxu0 %v352
    %374 = vmatprep.subr.mxu0 0.0
    %375 = vmatpush1.msra.mxu0 %v353
    %376 = vmatprep.subr.mxu0 0.0
    %377 = vmatpush1.msra.mxu0 %v354
    %378 = vmatprep.subr.mxu0 0.0
    %379 = vmatpush1.msra.mxu0 %v355
    %380 = vmatprep.subr.mxu0 0.0
    %381 = vmatpush1.msra.mxu0 %v356
    %382 = vmatprep.subr.mxu0 0.0
    %383 = vmatpush1.msra.mxu0 %v357
    %384 = vmatprep.subr.mxu0 0.0
    %385 = vmatpush1.msra.mxu0 %v358
    %386 = vmatprep.subr.mxu0 0.0
    %387 = vmatpush1.msra.mxu0 %v359
    %388 = vmatprep.subr.mxu0 0.0
    %389 = vmatpush1.msra.mxu0 %v360
    %390 = vmatprep.subr.mxu0 0.0
    %391 = vmatpush1.msra.mxu0 %v361
    %392 = vmatprep.subr.mxu0 0.0
    %393 = vmatpush1.msra.mxu0 %v362
    %394 = vmatprep.subr.mxu0 0.0
    %395 = vmatpush1.msra.mxu0 %v363
    %396 = vmatprep.subr.mxu0 0.0
    %397 = vmatpush1.msra.mxu0 0.0
    %398 = vmatprep.subr.mxu0 0.0
    %399 = vmatpush1.msra.mxu0 0.0
    %400 = vmatprep.subr.mxu0 0.0
    %401 = vmatpush1.msra.mxu0 0.0
    %402 = vmatprep.subr.mxu0 0.0
    %403 = vmatpush1.msra.mxu0 0.0
    %404 = vmatprep.subr.mxu0 0.0
    %405 = vmatpush1.msra.mxu0 0.0
    %406 = vmatprep.subr.mxu0 0.0
    %407 = vmatpush1.msra.mxu0 0.0
    %408 = vmatprep.subr.mxu0 0.0
    %409 = vmatpush1.msra.mxu0 0.0
    %410 = vmatprep.subr.mxu0 0.0
    %411 = vmatpush1.msra.mxu0 0.0
    %412 = vmatprep.subr.mxu0 0.0
    %413 = vmatpush1.msra.mxu0 0.0
    %414 = vmatprep.subr.mxu0 0.0
    %415 = vmatpush1.msra.mxu0 0.0
    %416 = vmatprep.subr.mxu0 0.0
    %417 = vmatpush1.msra.mxu0 0.0
    %418 = vmatprep.subr.mxu0 0.0
    %419 = vmatpush1.msra.mxu0 0.0
    %420 = vmatprep.subr.mxu0 0.0
    %421 = vmatpush1.msra.mxu0 0.0
    %422 = vmatprep.subr.mxu0 0.0
    %423 = vmatpush1.msra.mxu0 0.0
    %424 = vmatprep.subr.mxu0 0.0
    %425 = vmatpush1.msra.mxu0 0.0
    %426 = vmatprep.subr.mxu0 0.0
    %427 = vmatpush1.msra.mxu0 0.0
    %428 = vmatprep.mubr.f32.mxu0 0.0
    %429 = vmatmul.mubr.f32.gmra.mrb[0].mxu0 %v332
    %v430 = vpop.f32.mrb[0].mxu0
    %v431 = vadd.f32 0.0, %v430
    %v432 = vpop.f32.mrb[0].mxu0
    %433 = vmatprep.mubr.f32.mxu0 0.0
    %434 = vmatmul.mubr.f32.gmra.mrb[0].mxu0 %v333
    %v435 = vpop.f32.mrb[0].mxu0
    %v436 = vadd.f32 0.0, %v435
    %v437 = vpop.f32.mrb[0].mxu0
    %438 = vmatprep.mubr.f32.mxu0 0.0
    %439 = vmatmul.mubr.f32.gmra.mrb[0].mxu0 %v334
    %v440 = vpop.f32.mrb[0].mxu0
    %v441 = vadd.f32 0.0, %v440
    %v442 = vpop.f32.mrb[0].mxu0
    %443 = vmatprep.mubr.f32.mxu0 0.0
    %444 = vmatmul.mubr.f32.gmra.mrb[0].mxu0 %v335
    %v445 = vpop.f32.mrb[0].mxu0
    %v446 = vadd.f32 0.0, %v445
    %v447 = vpop.f32.mrb[0].mxu0
    %448 = vmatprep.mubr.f32.mxu0 0.0
    %449 = vmatmul.mubr.f32.gmra.mrb[0].mxu0 %v336
    %v450 = vpop.f32.mrb[0].mxu0
    %v451 = vadd.f32 0.0, %v450
    %v452 = vpop.f32.mrb[0].mxu0
    %453 = vmatprep.mubr.f32.mxu0 0.0
    %454 = vmatmul.mubr.f32.gmra.mrb[0].mxu0 %v337
    %v455 = vpop.f32.mrb[0].mxu0
    %v456 = vadd.f32 0.0, %v455
    %v457 = vpop.f32.mrb[0].mxu0
    %458 = vmatprep.mubr.f32.mxu0 0.0
    %459 = vmatmul.mubr.f32.gmra.mrb[0].mxu0 %v338
    %v460 = vpop.f32.mrb[0].mxu0
    %v461 = vadd.f32 0.0, %v460
    %v462 = vpop.f32.mrb[0].mxu0
    %463 = vmatprep.mubr.f32.mxu0 0.0
    %464 = vmatmul.mubr.f32.gmra.mrb[0].mxu0 %v339
    %v465 = vpop.f32.mrb[0].mxu0
    %v466 = vadd.f32 0.0, %v465
    %v467 = vpop.f32.mrb[0].mxu0
    %468 = vmatprep.mubr.f32.mxu0 0.0
    %469 = vmatmul.mubr.f32.gmra.mrb[0].mxu0 %v340
    %v470 = vpop.f32.mrb[0].mxu0
    %v471 = vadd.f32 0.0, %v470
    %v472 = vpop.f32.mrb[0].mxu0
    %473 = vmatprep.mubr.f32.mxu0 0.0
    %474 = vmatmul.mubr.f32.gmra.mrb[0].mxu0 %v341
    %v475 = vpop.f32.mrb[0].mxu0
    %v476 = vadd.f32 0.0, %v475
    %v477 = vpop.f32.mrb[0].mxu0
    %478 = vmatprep.mubr.f32.mxu0 0.0
    %479 = vmatmul.mubr.f32.gmra.mrb[0].mxu0 %v342
    %v480 = vpop.f32.mrb[0].mxu0
    %v481 = vadd.f32 0.0, %v480
    %v482 = vpop.f32.mrb[0].mxu0
    %483 = vmatprep.mubr.f32.mxu0 0.0
    %484 = vmatmul.mubr.f32.gmra.mrb[0].mxu0 %v343
    %v485 = vpop.f32.mrb[0].mxu0
    %v486 = vadd.f32 0.0, %v485
    %v487 = vpop.f32.mrb[0].mxu0
    %488 = vmatprep.mubr.f32.mxu0 0.0
    %489 = vmatmul.mubr.f32.gmra.mrb[0].mxu0 %v344
    %v490 = vpop.f32.mrb[0].mxu0
    %v491 = vadd.f32 0.0, %v490
    %v492 = vpop.f32.mrb[0].mxu0
    %493 = vmatprep.mubr.f32.mxu0 0.0
    %494 = vmatmul.mubr.f32.gmra.mrb[0].mxu0 %v345
    %v495 = vpop.f32.mrb[0].mxu0
    %v496 = vadd.f32 0.0, %v495
    %v497 = vpop.f32.mrb[0].mxu0
    %498 = vmatprep.mubr.f32.mxu0 0.0
    %499 = vmatmul.mubr.f32.gmra.mrb[0].mxu0 %v346
    %v500 = vpop.f32.mrb[0].mxu0
    %v501 = vadd.f32 0.0, %v500
    %v502 = vpop.f32.mrb[0].mxu0
    %503 = vmatprep.mubr.f32.mxu0 0.0
    %504 = vmatmul.mubr.f32.gmra.mrb[0].mxu0 %v347
    %v505 = vpop.f32.mrb[0].mxu0
    %v506 = vadd.f32 0.0, %v505
    %v507 = vpop.f32.mrb[0].mxu0
    %508 = vdwg.mxu0
    %v509 = vpack.c.bf16 %v436, %v431
    %v510 = vpack.c.bf16 %v446, %v441
    %v511 = vpack.c.bf16 %v456, %v451
    %v512 = vpack.c.bf16 %v466, %v461
    %v513 = vpack.c.bf16 %v476, %v471
    %v514 = vpack.c.bf16 %v486, %v481
    %v515 = vpack.c.bf16 %v496, %v491
    %v516 = vpack.c.bf16 %v506, %v501
    %v525 = vunpack.c.l.b16 %v509
    %v526 = vunpack.c.h.b16 %v509
    %v527 = vunpack.c.l.b16 %v510
    %v528 = vunpack.c.h.b16 %v510
    %v529 = vunpack.c.l.b16 %v511
    %v530 = vunpack.c.h.b16 %v511
    %v531 = vunpack.c.l.b16 %v512
    %v532 = vunpack.c.h.b16 %v512
    %v533 = vunpack.c.l.b16 %v513
    %v534 = vunpack.c.h.b16 %v513
    %v535 = vunpack.c.l.b16 %v514
    %v536 = vunpack.c.h.b16 %v514
    %v537 = vunpack.c.l.b16 %v515
    %v538 = vunpack.c.h.b16 %v515
    %v539 = vunpack.c.l.b16 %v516
    %v540 = vunpack.c.h.b16 %v516
    %v541 = vpack.c.b16 %v525, %v525
    %v542 = vpack.c.b16 %v526, %v526
    %v543 = vpack.c.b16 %v527, %v527
    %v544 = vpack.c.b16 %v528, %v528
    %v545 = vpack.c.b16 %v529, %v529
    %v546 = vpack.c.b16 %v530, %v530
    %v547 = vpack.c.b16 %v531, %v531
    %v548 = vpack.c.b16 %v532, %v532
    %v549 = vpack.c.b16 %v533, %v533
    %v550 = vpack.c.b16 %v534, %v534
    %v551 = vpack.c.b16 %v535, %v535
    %v552 = vpack.c.b16 %v536, %v536
    %v553 = vpack.c.b16 %v537, %v537
    %v554 = vpack.c.b16 %v538, %v538
    %v555 = vpack.c.b16 %v539, %v539
    %v556 = vpack.c.b16 %v540, %v540
    %573 = vst [vmem:[%s3] sm:$0xf] %v541
    %574 = vst [vmem:[%s3 + $0x4] sm:$0xf] %v542
    %575 = vst [vmem:[%s3 + $0x8] sm:$0xf] %v543
    %576 = vst [vmem:[%s3 + $0xc] sm:$0xf] %v544
    %577 = vst [vmem:[%s3 + $0x10] sm:$0xf] %v545
    %578 = vst [vmem:[%s3 + $0x14] sm:$0xf] %v546
    %579 = vst [vmem:[%s3 + $0x18] sm:$0xf] %v547
    %580 = vst [vmem:[%s3 + $0x1c] sm:$0xf] %v548
    %581 = vst [vmem:[%s3 + $0x20] sm:$0xf] %v549
    %582 = vst [vmem:[%s3 + $0x24] sm:$0xf] %v550
    %583 = vst [vmem:[%s3 + $0x28] sm:$0xf] %v551
    %584 = vst [vmem:[%s3 + $0x2c] sm:$0xf] %v552
    %585 = vst [vmem:[%s3 + $0x30] sm:$0xf] %v553
    %586 = vst [vmem:[%s3 + $0x34] sm:$0xf] %v554
    %587 = vst [vmem:[%s3 + $0x38] sm:$0xf] %v555
    %588 = vst [vmem:[%s3 + $0x3c] sm:$0xf] %v556
  $region21: #{gcn_base_forward.3} parent=0 // pred_fallthru
    _
  // Predicated region
  $region22: #{gcn_base_forward.3} parent=0 // pred_check
    _
  $region23: #{gcn_base_forward.3} parent=0 // pred_check_branch
    %590 = sbr.rel (0) target = $region25
  $region24: #{gcn_base_forward.3} parent=0 // pred_region
    _
  $region25: #{gcn_base_forward.3} parent=0 // pred_fallthru
    _
  // Predicated region
  $region26: #{gcn_base_forward.3} parent=0 // pred_check
    _
  $region27: #{gcn_base_forward.3} parent=0 // pred_check_branch
    %592 = sbr.rel (0) target = $region29
  $region28: #{gcn_base_forward.3} parent=0 // pred_region
    _
  $region29: #{gcn_base_forward.3} parent=0 // pred_fallthru
    _

// kernel: gcn_base_forward.5
$region0: #{gcn_base_forward.5}
  #allocation0 [shape = 'u32[]', space=smem, size = 0x4, offset = 0x4, fixed_abs, tag = 'smem constant byte address 0x4 - core index']
  #allocation1 [shape = 'u32[144,128]{1,0:T(1,128)}', space=vmem, size = 0x12000, scoped, tag = 'internal scratch']
  %s0 = inlined_call_operand.vmem [shape: bf16[128,128], index: 0, kind: input, shape index: {}]
  %s1 = inlined_call_operand.vmem [shape: bf16[128,128], index: 1, kind: input, shape index: {}]
  %s2 = inlined_call_operand.vmem [shape: f32[128,128], index: 2, kind: output, shape index: {}]
  %s3 = sld [smem:[#allocation0]]
  $region22: #{gcn_base_forward.5} parent=0
    _
  %s5 = ssub.s32 1, %s3
  %s6 = scalar_select 0, %s5, %s3
  // Predicated region
  $region2: #{gcn_base_forward.5} parent=0 // pred_check
    _
  $region3: #{gcn_base_forward.5} parent=0 // pred_check_branch
    %8 = sbr.rel (0) target = $region5
  $region4: #{gcn_base_forward.5} parent=0 // pred_region
    _
  $region5: #{gcn_base_forward.5} parent=0 // pred_fallthru
    _
  // Predicated region
  $region6: #{gcn_base_forward.5} parent=0 // pred_check
    _
  $region7: #{gcn_base_forward.5} parent=0 // pred_check_branch
    %10 = sbr.rel (0) target = $region9
  $region8: #{gcn_base_forward.5} parent=0 // pred_region
    _
  $region9: #{gcn_base_forward.5} parent=0 // pred_fallthru
    _
  %p12 = scmp.eq.s32.totalorder 0, 0
  // Predicated region
  $region10: #{gcn_base_forward.5} parent=0 // pred_check
    %p13 = pneg %p12
  $region11: #{gcn_base_forward.5} parent=0 // pred_check_branch
    %15 = sbr.rel (%p13) target = $region13
  $region12: #{gcn_base_forward.5} parent=0 // pred_region
    %16 = vst [vmem:[%s2] sm:$0xff] 0.0
    %17 = vst [vmem:[%s2 + $0x8] sm:$0xff] 0.0
    %18 = vst [vmem:[%s2 + $0x10] sm:$0xff] 0.0
    %19 = vst [vmem:[%s2 + $0x18] sm:$0xff] 0.0
    %20 = vst [vmem:[%s2 + $0x20] sm:$0xff] 0.0
    %21 = vst [vmem:[%s2 + $0x28] sm:$0xff] 0.0
    %22 = vst [vmem:[%s2 + $0x30] sm:$0xff] 0.0
    %23 = vst [vmem:[%s2 + $0x38] sm:$0xff] 0.0
    %24 = vst [vmem:[%s2 + $0x40] sm:$0xff] 0.0
    %25 = vst [vmem:[%s2 + $0x48] sm:$0xff] 0.0
    %26 = vst [vmem:[%s2 + $0x50] sm:$0xff] 0.0
    %27 = vst [vmem:[%s2 + $0x58] sm:$0xff] 0.0
    %28 = vst [vmem:[%s2 + $0x60] sm:$0xff] 0.0
    %29 = vst [vmem:[%s2 + $0x68] sm:$0xff] 0.0
    %30 = vst [vmem:[%s2 + $0x70] sm:$0xff] 0.0
    %31 = vst [vmem:[%s2 + $0x78] sm:$0xff] 0.0
  $region13: #{gcn_base_forward.5} parent=0 // pred_fallthru
    _
  %s32 = smul.u32 0, 128
  %s33 = sshra.s32 %s32, 3
  %s34 = sand.u32 %s32, 7
  %s35 = smul.addr %s33, 4
  %s36 = scalar_lea.vmem %s1, %s35
  %v37 = vld [vmem:[%s36] sm:$0xf]
  %v38 = vld [vmem:[%s36 + $0x4] sm:$0xf]
  %v39 = vld [vmem:[%s36 + $0x8] sm:$0xf]
  %v40 = vld [vmem:[%s36 + $0xc] sm:$0xf]
  %v41 = vld [vmem:[%s36 + $0x10] sm:$0xf]
  %v42 = vld [vmem:[%s36 + $0x14] sm:$0xf]
  %v43 = vld [vmem:[%s36 + $0x18] sm:$0xf]
  %v44 = vld [vmem:[%s36 + $0x1c] sm:$0xf]
  %v45 = vld [vmem:[%s36 + $0x20] sm:$0xf]
  %v46 = vld [vmem:[%s36 + $0x24] sm:$0xf]
  %v47 = vld [vmem:[%s36 + $0x28] sm:$0xf]
  %v48 = vld [vmem:[%s36 + $0x2c] sm:$0xf]
  %v49 = vld [vmem:[%s36 + $0x30] sm:$0xf]
  %v50 = vld [vmem:[%s36 + $0x34] sm:$0xf]
  %v51 = vld [vmem:[%s36 + $0x38] sm:$0xf]
  %v52 = vld [vmem:[%s36 + $0x3c] sm:$0xf]
  %v53 = vld [vmem:[%s2] sm:$0xff]
  %v54 = vld [vmem:[%s2 + $0x8] sm:$0xff]
  %v55 = vld [vmem:[%s2 + $0x10] sm:$0xff]
  %v56 = vld [vmem:[%s2 + $0x18] sm:$0xff]
  %v57 = vld [vmem:[%s2 + $0x20] sm:$0xff]
  %v58 = vld [vmem:[%s2 + $0x28] sm:$0xff]
  %v59 = vld [vmem:[%s2 + $0x30] sm:$0xff]
  %v60 = vld [vmem:[%s2 + $0x38] sm:$0xff]
  %v61 = vld [vmem:[%s2 + $0x40] sm:$0xff]
  %v62 = vld [vmem:[%s2 + $0x48] sm:$0xff]
  %v63 = vld [vmem:[%s2 + $0x50] sm:$0xff]
  %v64 = vld [vmem:[%s2 + $0x58] sm:$0xff]
  %v65 = vld [vmem:[%s2 + $0x60] sm:$0xff]
  %v66 = vld [vmem:[%s2 + $0x68] sm:$0xff]
  %v67 = vld [vmem:[%s2 + $0x70] sm:$0xff]
  %v68 = vld [vmem:[%s2 + $0x78] sm:$0xff]
  %v69 = vld [vmem:[%s0] sm:$0xf]
  %v70 = vld [vmem:[%s0 + $0x4] sm:$0xf]
  %v71 = vld [vmem:[%s0 + $0x8] sm:$0xf]
  %v72 = vld [vmem:[%s0 + $0xc] sm:$0xf]
  %v73 = vld [vmem:[%s0 + $0x10] sm:$0xf]
  %v74 = vld [vmem:[%s0 + $0x14] sm:$0xf]
  %v75 = vld [vmem:[%s0 + $0x18] sm:$0xf]
  %v76 = vld [vmem:[%s0 + $0x1c] sm:$0xf]
  %v77 = vld [vmem:[%s0 + $0x20] sm:$0xf]
  %v78 = vld [vmem:[%s0 + $0x24] sm:$0xf]
  %v79 = vld [vmem:[%s0 + $0x28] sm:$0xf]
  %v80 = vld [vmem:[%s0 + $0x2c] sm:$0xf]
  %v81 = vld [vmem:[%s0 + $0x30] sm:$0xf]
  %v82 = vld [vmem:[%s0 + $0x34] sm:$0xf]
  %v83 = vld [vmem:[%s0 + $0x38] sm:$0xf]
  %v84 = vld [vmem:[%s0 + $0x3c] sm:$0xf]
  %v101 = vunpack.c.l.b16 %v69
  %v102 = vunpack.c.l.b16 %v70
  %v103 = vunpack.c.l.b16 %v71
  %v104 = vunpack.c.l.b16 %v72
  %v105 = vunpack.c.l.b16 %v73
  %v106 = vunpack.c.l.b16 %v74
  %v107 = vunpack.c.l.b16 %v75
  %v108 = vunpack.c.l.b16 %v76
  %v109 = vunpack.c.l.b16 %v77
  %v110 = vunpack.c.l.b16 %v78
  %v111 = vunpack.c.l.b16 %v79
  %v112 = vunpack.c.l.b16 %v80
  %v113 = vunpack.c.l.b16 %v81
  %v114 = vunpack.c.l.b16 %v82
  %v115 = vunpack.c.l.b16 %v83
  %v116 = vunpack.c.l.b16 %v84
  %v117 = vpack.c.b16 %v102, %v101
  %v118 = vpack.c.b16 %v104, %v103
  %v119 = vpack.c.b16 %v106, %v105
  %v120 = vpack.c.b16 %v108, %v107
  %v121 = vpack.c.b16 %v110, %v109
  %v122 = vpack.c.b16 %v112, %v111
  %v123 = vpack.c.b16 %v114, %v113
  %v124 = vpack.c.b16 %v116, %v115
  %v149 = vunpack.c.l.b16 %v37
  %v150 = vunpack.c.l.b16 %v38
  %v151 = vunpack.c.l.b16 %v39
  %v152 = vunpack.c.l.b16 %v40
  %v153 = vunpack.c.l.b16 %v41
  %v154 = vunpack.c.l.b16 %v42
  %v155 = vunpack.c.l.b16 %v43
  %v156 = vunpack.c.l.b16 %v44
  %v157 = vunpack.c.l.b16 %v45
  %v158 = vunpack.c.l.b16 %v46
  %v159 = vunpack.c.l.b16 %v47
  %v160 = vunpack.c.l.b16 %v48
  %v161 = vunpack.c.l.b16 %v49
  %v162 = vunpack.c.l.b16 %v50
  %v163 = vunpack.c.l.b16 %v51
  %v164 = vunpack.c.l.b16 %v52
  %v165 = vpack.c.b16 %v150, %v149
  %v166 = vpack.c.b16 %v152, %v151
  %v167 = vpack.c.b16 %v154, %v153
  %v168 = vpack.c.b16 %v156, %v155
  %v169 = vpack.c.b16 %v158, %v157
  %v170 = vpack.c.b16 %v160, %v159
  %v171 = vpack.c.b16 %v162, %v161
  %v172 = vpack.c.b16 %v164, %v163
  %181 = vmatprep.subr.bf16.mxu0 0
  %182 = vmatpush1.bf16.msra.mxu0 %v165
  %183 = vmatprep.subr.bf16.mxu0 0
  %184 = vmatpush1.bf16.msra.mxu0 %v166
  %185 = vmatprep.subr.bf16.mxu0 0
  %186 = vmatpush1.bf16.msra.mxu0 %v167
  %187 = vmatprep.subr.bf16.mxu0 0
  %188 = vmatpush1.bf16.msra.mxu0 %v168
  %189 = vmatprep.subr.bf16.mxu0 0
  %190 = vmatpush1.bf16.msra.mxu0 %v169
  %191 = vmatprep.subr.bf16.mxu0 0
  %192 = vmatpush1.bf16.msra.mxu0 %v170
  %193 = vmatprep.subr.bf16.mxu0 0
  %194 = vmatpush1.bf16.msra.mxu0 %v171
  %195 = vmatprep.subr.bf16.mxu0 0
  %196 = vmatpush1.bf16.msra.mxu0 %v172
  %197 = vmatprep.subr.bf16.mxu0 0
  %198 = vmatpush1.bf16.msra.mxu0 0
  %199 = vmatprep.subr.bf16.mxu0 0
  %200 = vmatpush1.bf16.msra.mxu0 0
  %201 = vmatprep.subr.bf16.mxu0 0
  %202 = vmatpush1.bf16.msra.mxu0 0
  %203 = vmatprep.subr.bf16.mxu0 0
  %204 = vmatpush1.bf16.msra.mxu0 0
  %205 = vmatprep.subr.bf16.mxu0 0
  %206 = vmatpush1.bf16.msra.mxu0 0
  %207 = vmatprep.subr.bf16.mxu0 0
  %208 = vmatpush1.bf16.msra.mxu0 0
  %209 = vmatprep.subr.bf16.mxu0 0
  %210 = vmatpush1.bf16.msra.mxu0 0
  %211 = vmatprep.subr.bf16.mxu0 0
  %212 = vmatpush1.bf16.msra.mxu0 0
  %213 = vmatprep.mubr.bf16.mxu0 0
  %214 = vmatmul.mubr.bf16.gmra.mrb[0].mxu0 %v117
  %v215 = vpop.f32.mrb[0].mxu0
  %v216 = vadd.f32 0.0, %v215
  %v217 = vpop.f32.mrb[0].mxu0
  %v218 = vpop.f32.mrb[0].mxu0
  %v219 = vadd.f32 0.0, %v218
  %v220 = vpop.f32.mrb[0].mxu0
  %221 = vmatprep.mubr.bf16.mxu0 0
  %222 = vmatmul.mubr.bf16.gmra.mrb[0].mxu0 %v118
  %v223 = vpop.f32.mrb[0].mxu0
  %v224 = vadd.f32 0.0, %v223
  %v225 = vpop.f32.mrb[0].mxu0
  %v226 = vpop.f32.mrb[0].mxu0
  %v227 = vadd.f32 0.0, %v226
  %v228 = vpop.f32.mrb[0].mxu0
  %229 = vmatprep.mubr.bf16.mxu0 0
  %230 = vmatmul.mubr.bf16.gmra.mrb[0].mxu0 %v119
  %v231 = vpop.f32.mrb[0].mxu0
  %v232 = vadd.f32 0.0, %v231
  %v233 = vpop.f32.mrb[0].mxu0
  %v234 = vpop.f32.mrb[0].mxu0
  %v235 = vadd.f32 0.0, %v234
  %v236 = vpop.f32.mrb[0].mxu0
  %237 = vmatprep.mubr.bf16.mxu0 0
  %238 = vmatmul.mubr.bf16.gmra.mrb[0].mxu0 %v120
  %v239 = vpop.f32.mrb[0].mxu0
  %v240 = vadd.f32 0.0, %v239
  %v241 = vpop.f32.mrb[0].mxu0
  %v242 = vpop.f32.mrb[0].mxu0
  %v243 = vadd.f32 0.0, %v242
  %v244 = vpop.f32.mrb[0].mxu0
  %245 = vmatprep.mubr.bf16.mxu0 0
  %246 = vmatmul.mubr.bf16.gmra.mrb[0].mxu0 %v121
  %v247 = vpop.f32.mrb[0].mxu0
  %v248 = vadd.f32 0.0, %v247
  %v249 = vpop.f32.mrb[0].mxu0
  %v250 = vpop.f32.mrb[0].mxu0
  %v251 = vadd.f32 0.0, %v250
  %v252 = vpop.f32.mrb[0].mxu0
  %253 = vmatprep.mubr.bf16.mxu0 0
  %254 = vmatmul.mubr.bf16.gmra.mrb[0].mxu0 %v122
  %v255 = vpop.f32.mrb[0].mxu0
  %v256 = vadd.f32 0.0, %v255
  %v257 = vpop.f32.mrb[0].mxu0
  %v258 = vpop.f32.mrb[0].mxu0
  %v259 = vadd.f32 0.0, %v258
  %v260 = vpop.f32.mrb[0].mxu0
  %261 = vmatprep.mubr.bf16.mxu0 0
  %262 = vmatmul.mubr.bf16.gmra.mrb[0].mxu0 %v123
  %v263 = vpop.f32.mrb[0].mxu0
  %v264 = vadd.f32 0.0, %v263
  %v265 = vpop.f32.mrb[0].mxu0
  %v266 = vpop.f32.mrb[0].mxu0
  %v267 = vadd.f32 0.0, %v266
  %v268 = vpop.f32.mrb[0].mxu0
  %269 = vmatprep.mubr.bf16.mxu0 0
  %270 = vmatmul.mubr.bf16.gmra.mrb[0].mxu0 %v124
  %v271 = vpop.f32.mrb[0].mxu0
  %v272 = vadd.f32 0.0, %v271
  %v273 = vpop.f32.mrb[0].mxu0
  %v274 = vpop.f32.mrb[0].mxu0
  %v275 = vadd.f32 0.0, %v274
  %v276 = vpop.f32.mrb[0].mxu0
  %277 = vdwg.mxu0
  %v278 = vadd.f32 %v53, %v216
  %v279 = vadd.f32 %v54, %v219
  %v280 = vadd.f32 %v55, %v224
  %v281 = vadd.f32 %v56, %v227
  %v282 = vadd.f32 %v57, %v232
  %v283 = vadd.f32 %v58, %v235
  %v284 = vadd.f32 %v59, %v240
  %v285 = vadd.f32 %v60, %v243
  %v286 = vadd.f32 %v61, %v248
  %v287 = vadd.f32 %v62, %v251
  %v288 = vadd.f32 %v63, %v256
  %v289 = vadd.f32 %v64, %v259
  %v290 = vadd.f32 %v65, %v264
  %v291 = vadd.f32 %v66, %v267
  %v292 = vadd.f32 %v67, %v272
  %v293 = vadd.f32 %v68, %v275
  %294 = vst [vmem:[%s2] sm:$0xff] %v278
  %295 = vst [vmem:[%s2 + $0x8] sm:$0xff] %v279
  %296 = vst [vmem:[%s2 + $0x10] sm:$0xff] %v280
  %297 = vst [vmem:[%s2 + $0x18] sm:$0xff] %v281
  %298 = vst [vmem:[%s2 + $0x20] sm:$0xff] %v282
  %299 = vst [vmem:[%s2 + $0x28] sm:$0xff] %v283
  %300 = vst [vmem:[%s2 + $0x30] sm:$0xff] %v284
  %301 = vst [vmem:[%s2 + $0x38] sm:$0xff] %v285
  %302 = vst [vmem:[%s2 + $0x40] sm:$0xff] %v286
  %303 = vst [vmem:[%s2 + $0x48] sm:$0xff] %v287
  %304 = vst [vmem:[%s2 + $0x50] sm:$0xff] %v288
  %305 = vst [vmem:[%s2 + $0x58] sm:$0xff] %v289
  %306 = vst [vmem:[%s2 + $0x60] sm:$0xff] %v290
  %307 = vst [vmem:[%s2 + $0x68] sm:$0xff] %v291
  %308 = vst [vmem:[%s2 + $0x70] sm:$0xff] %v292
  %309 = vst [vmem:[%s2 + $0x78] sm:$0xff] %v293
  // Predicated region
  $region14: #{gcn_base_forward.5} parent=0 // pred_check
    _
  $region15: #{gcn_base_forward.5} parent=0 // pred_check_branch
    %311 = sbr.rel (0) target = $region17
  $region16: #{gcn_base_forward.5} parent=0 // pred_region
    _
  $region17: #{gcn_base_forward.5} parent=0 // pred_fallthru
    _
  // Predicated region
  $region18: #{gcn_base_forward.5} parent=0 // pred_check
    _
  $region19: #{gcn_base_forward.5} parent=0 // pred_check_branch
    %313 = sbr.rel (0) target = $region21
  $region20: #{gcn_base_forward.5} parent=0 // pred_region
    _
  $region21: #{gcn_base_forward.5} parent=0 // pred_fallthru
    _

</llo_original>
